<compile_context>
chip_gen: v7x
topology: tpu7x:2x2x1
jax: 0.10.0
libtpu: 0.0.40
codegen_flags: <defaults>
</compile_context>

<pallas_src>
import jax
import jax.numpy as jnp
from jax.experimental import pallas as pl
from jax.experimental.pallas import tpu as pltpu

N_PAD = 128   # lane-dense padded output width (true out_dim = 3)


def mlp_kernel(x_ref, w1b_ref, w2_ref, b2_ref, o_ref):
    x = x_ref[...]            # (TB, 4)   f32
    w1b = w1b_ref[...]        # (8, 256)  rows 0..3 = W1, row 4 = b1, rows 5..7 = 0

    # ---- Layer 1 on the VPU: h = b1 + sum_k x[:,k] * W1[k,:]  (no MXU round-trip) ----
    h = w1b[4:5, :] + x[:, 0:1] * w1b[0:1, :]
    h = h + x[:, 1:2] * w1b[1:2, :]
    h = h + x[:, 2:3] * w1b[2:3, :]
    h = h + x[:, 3:4] * w1b[3:4, :]
    h = jnp.maximum(h, 0.0)   # ReLU, f32

    # ---- Layer 2 on the MXU: (TB,256) @ (256,128 zero-padded) -> lane-dense store ----
    out = jnp.dot(h, w2_ref[...], preferred_element_type=jnp.float32)
    out = out + b2_ref[...]   # (1,128) broadcast (zero-padded b2)
    o_ref[...] = out.astype(o_ref.dtype)


def mlp_forward(x, w1, b1, w2, b2, *, tile_b=256):
    """x: (B,4) f32; w1: (4,256); b1: (256,); w2: (256,3); b2: (3,).  Returns (B,3)."""
    B, in_dim = x.shape
    hid = w1.shape[1]
    out_dim = w2.shape[1]

    # Pack W1 + b1 into one sublane-aligned (8, hid) block.
    w1b = jnp.zeros((8, hid), jnp.float32).at[:in_dim, :].set(w1).at[in_dim, :].set(b1)
    # Zero-pad W2 / b2 to a lane-dense 128-wide output.
    w2p = jnp.zeros((hid, N_PAD), jnp.float32).at[:, :out_dim].set(w2)
    b2p = jnp.zeros((1, N_PAD), jnp.float32).at[0, :out_dim].set(b2)

    # Batch tiling: TILE_B rows per grid step, multiple of 8; pad B up if needed.
    tb = min(tile_b, ((B + 7) // 8) * 8)
    n_tiles = (B + tb - 1) // tb
    Bp = n_tiles * tb
    if Bp != B:
        x = jnp.pad(x, ((0, Bp - B), (0, 0)))

    vmem = pltpu.MemorySpace.VMEM
    out_padded = pl.pallas_call(
        mlp_kernel,
        out_shape=jax.ShapeDtypeStruct((Bp, N_PAD), jnp.float32),
        grid=(n_tiles,),
        in_specs=[
            pl.BlockSpec((tb, in_dim), lambda i: (i, 0), memory_space=vmem),
            pl.BlockSpec((8, hid),     lambda i: (0, 0), memory_space=vmem),
            pl.BlockSpec((hid, N_PAD), lambda i: (0, 0), memory_space=vmem),
            pl.BlockSpec((1, N_PAD),   lambda i: (0, 0), memory_space=vmem),
        ],
        out_specs=pl.BlockSpec((tb, N_PAD), lambda i: (i, 0), memory_space=vmem),
        compiler_params=pltpu.CompilerParams(
            dimension_semantics=("parallel",)),
    )(x, w1b, w2p, b2p)

    return out_padded[:B, :out_dim]


def init_params(key):
    # Deterministic init mimicking PyTorch nn.Linear default:
    # U(-1/sqrt(fan_in), 1/sqrt(fan_in)) for both weights and biases.
    k1, k2, k3, k4 = jax.random.split(key, 4)
    in1, hid, out = 4, 256, 3
    bound1 = 1.0 / jnp.sqrt(in1)
    bound2 = 1.0 / jnp.sqrt(hid)
    w1 = jax.random.uniform(k1, (in1, hid), jnp.float32, -bound1, bound1)
    b1 = jax.random.uniform(k2, (hid,), jnp.float32, -bound1, bound1)
    w2 = jax.random.uniform(k3, (hid, out), jnp.float32, -bound2, bound2)
    b2 = jax.random.uniform(k4, (out,), jnp.float32, -bound2, bound2)
    return w1, b1, w2, b2


if __name__ == "__main__":
    key = jax.random.PRNGKey(0)
    pkey, xkey = jax.random.split(key)
    w1, b1, w2, b2 = init_params(pkey)

    batch = 8
    x = jax.random.normal(xkey, (batch, 4), jnp.float32)

    out = mlp_forward(x, w1, b1, w2, b2)
    jax.block_until_ready(out)

    # Reference check in plain JAX (same math as the PyTorch module).
    ref = jnp.maximum(x @ w1 + b1[None, :], 0.0) @ w2 + b2[None, :]
    assert out.shape == (batch, 3)
    assert jnp.allclose(out, ref, atol=1e-5, rtol=1e-5)

    print("KERNEL_OK")
</pallas_src>

<mosaic_0001>
module attributes {stable_mosaic.version = 11 : i64} {
  func.func @mlp_kernel(%arg0: i32, %arg1: memref<8x4xf32, #tpu.memory_space<vmem>>, %arg2: memref<8x256xf32, #tpu.memory_space<vmem>>, %arg3: memref<256x128xf32, #tpu.memory_space<vmem>>, %arg4: memref<1x128xf32, #tpu.memory_space<vmem>>, %arg5: memref<8x128xf32, #tpu.memory_space<vmem>>) attributes {dimension_semantics = [#tpu.dimension_semantics<parallel>], iteration_bounds = array<i64: 1>, scalar_prefetch = 0 : i64, scratch_operands = 0 : i64, tpu.core_type = #tpu.core_type<tc>, window_params = [{transform_indices = @transform_0, window_bounds = array<i64: 8, 4>}, {pipeline_mode = #tpu.pipeline_mode<synchronous>, transform_indices = @transform_1, window_bounds = array<i64: 8, 256>}, {pipeline_mode = #tpu.pipeline_mode<synchronous>, transform_indices = @transform_2, window_bounds = array<i64: 256, 128>}, {pipeline_mode = #tpu.pipeline_mode<synchronous>, transform_indices = @transform_3, window_bounds = array<i64: 1, 128>}, {transform_indices = @transform_4, window_bounds = array<i64: 8, 128>}]} {
    %c0 = arith.constant 0 : index
    %c0_0 = arith.constant 0 : index
    %0 = vector.load %arg1[%c0, %c0_0] : memref<8x4xf32, #tpu.memory_space<vmem>>, vector<8x4xf32>
    %c0_1 = arith.constant 0 : index
    %c0_2 = arith.constant 0 : index
    %1 = vector.load %arg2[%c0_1, %c0_2] : memref<8x256xf32, #tpu.memory_space<vmem>>, vector<8x256xf32>
    %2 = vector.extract_strided_slice %1 {offsets = [4, 0], sizes = [1, 256], strides = [1, 1]} : vector<8x256xf32> to vector<1x256xf32>
    %3 = vector.extract_strided_slice %0 {offsets = [0, 0], sizes = [8, 1], strides = [1, 1]} : vector<8x4xf32> to vector<8x1xf32>
    %4 = vector.extract_strided_slice %1 {offsets = [0, 0], sizes = [1, 256], strides = [1, 1]} : vector<8x256xf32> to vector<1x256xf32>
    %5 = vector.broadcast %3 : vector<8x1xf32> to vector<8x256xf32>
    %6 = vector.broadcast %4 : vector<1x256xf32> to vector<8x256xf32>
    %7 = arith.mulf %5, %6 : vector<8x256xf32>
    %8 = vector.broadcast %2 : vector<1x256xf32> to vector<8x256xf32>
    %9 = arith.addf %8, %7 : vector<8x256xf32>
    %10 = vector.extract_strided_slice %0 {offsets = [0, 1], sizes = [8, 1], strides = [1, 1]} : vector<8x4xf32> to vector<8x1xf32>
    %11 = vector.extract_strided_slice %1 {offsets = [1, 0], sizes = [1, 256], strides = [1, 1]} : vector<8x256xf32> to vector<1x256xf32>
    %12 = vector.broadcast %10 : vector<8x1xf32> to vector<8x256xf32>
    %13 = vector.broadcast %11 : vector<1x256xf32> to vector<8x256xf32>
    %14 = arith.mulf %12, %13 : vector<8x256xf32>
    %15 = arith.addf %9, %14 : vector<8x256xf32>
    %16 = vector.extract_strided_slice %0 {offsets = [0, 2], sizes = [8, 1], strides = [1, 1]} : vector<8x4xf32> to vector<8x1xf32>
    %17 = vector.extract_strided_slice %1 {offsets = [2, 0], sizes = [1, 256], strides = [1, 1]} : vector<8x256xf32> to vector<1x256xf32>
    %18 = vector.broadcast %16 : vector<8x1xf32> to vector<8x256xf32>
    %19 = vector.broadcast %17 : vector<1x256xf32> to vector<8x256xf32>
    %20 = arith.mulf %18, %19 : vector<8x256xf32>
    %21 = arith.addf %15, %20 : vector<8x256xf32>
    %22 = vector.extract_strided_slice %0 {offsets = [0, 3], sizes = [8, 1], strides = [1, 1]} : vector<8x4xf32> to vector<8x1xf32>
    %23 = vector.extract_strided_slice %1 {offsets = [3, 0], sizes = [1, 256], strides = [1, 1]} : vector<8x256xf32> to vector<1x256xf32>
    %24 = vector.broadcast %22 : vector<8x1xf32> to vector<8x256xf32>
    %25 = vector.broadcast %23 : vector<1x256xf32> to vector<8x256xf32>
    %26 = arith.mulf %24, %25 : vector<8x256xf32>
    %27 = arith.addf %21, %26 : vector<8x256xf32>
    %cst = arith.constant 0.000000e+00 : f32
    %28 = vector.broadcast %cst : f32 to vector<8x256xf32>
    %29 = arith.maximumf %27, %28 : vector<8x256xf32>
    %c0_3 = arith.constant 0 : index
    %c0_4 = arith.constant 0 : index
    %30 = vector.load %arg3[%c0_3, %c0_4] : memref<256x128xf32, #tpu.memory_space<vmem>>, vector<256x128xf32>
    %cst_5 = arith.constant dense<0.000000e+00> : vector<8x128xf32>
    %31 = tpu.matmul %29, %30, %cst_5 {dimension_numbers = #tpu.dot_dimension_numbers<[1], [0], [0], [1], [0, 0, 1, 1], [], []>} : vector<8x256xf32>, vector<256x128xf32>, vector<8x128xf32> -> vector<8x128xf32>
    %c0_6 = arith.constant 0 : index
    %c0_7 = arith.constant 0 : index
    %32 = vector.load %arg4[%c0_6, %c0_7] : memref<1x128xf32, #tpu.memory_space<vmem>>, vector<1x128xf32>
    %33 = vector.broadcast %32 : vector<1x128xf32> to vector<8x128xf32>
    %34 = arith.addf %31, %33 : vector<8x128xf32>
    %c0_8 = arith.constant 0 : index
    %c0_9 = arith.constant 0 : index
    %35 = vector.load %arg5[%c0_8, %c0_9] : memref<8x128xf32, #tpu.memory_space<vmem>>, vector<8x128xf32>
    tpu.vector_store %arg5[%c0_8, %c0_9], %34 {strides = array<i32>} : memref<8x128xf32, #tpu.memory_space<vmem>>, vector<8x128xf32>,
    return
  }
  func.func @transform_0(%arg0: i32) -> (i32, i32) {
    %c0_i32 = arith.constant 0 : i32
    %c0_i32_0 = arith.constant 0 : i32
    return %arg0, %c0_i32 : i32, i32
  }
  func.func @transform_1(%arg0: i32) -> (i32, i32) {
    %c0_i32 = arith.constant 0 : i32
    %c0_i32_0 = arith.constant 0 : i32
    %c0_i32_1 = arith.constant 0 : i32
    return %c0_i32, %c0_i32_0 : i32, i32
  }
  func.func @transform_2(%arg0: i32) -> (i32, i32) {
    %c0_i32 = arith.constant 0 : i32
    %c0_i32_0 = arith.constant 0 : i32
    %c0_i32_1 = arith.constant 0 : i32
    return %c0_i32, %c0_i32_0 : i32, i32
  }
  func.func @transform_3(%arg0: i32) -> (i32, i32) {
    %c0_i32 = arith.constant 0 : i32
    %c0_i32_0 = arith.constant 0 : i32
    %c0_i32_1 = arith.constant 0 : i32
    return %c0_i32, %c0_i32_0 : i32, i32
  }
  func.func @transform_4(%arg0: i32) -> (i32, i32) {
    %c0_i32 = arith.constant 0 : i32
    %c0_i32_0 = arith.constant 0 : i32
    return %arg0, %c0_i32 : i32, i32
  }
}

</mosaic_0001>

<llo_original>
// kernel: tpu_custom_call.1
$region0: #{tpu_custom_call.1}
  #allocation0 [shape = 'u32[]', space=smem, size = 0x4, offset = 0x4, fixed_abs, tag = 'smem constant byte address 0x4 - core index']
  #allocation1 [shape = 'u32[144,128]{1,0:T(1,128)}', space=vmem, size = 0x12000, scoped, tag = 'internal scratch']
  %s0 = inlined_call_operand.vmem [shape: f32[8,4], index: 0, kind: input, shape index: {}]
  %s1 = inlined_call_operand.hbm [shape: f32[8,256], index: 1, kind: input, shape index: {}]
  %s2 = inlined_call_operand.hbm [shape: f32[256,128], index: 2, kind: input, shape index: {}]
  %s3 = inlined_call_operand.vmem [shape: f32[1,128], index: 3, kind: input, shape index: {}]
  %s4 = inlined_call_operand.hbm [shape: f32[8,128], index: 4, kind: output, shape index: {}]
  %s5 = sld [smem:[#allocation0]]
  $region34: #{tpu_custom_call.1} parent=0
    _
  %s7 = ssub.s32 1, %s5
  %s8 = scalar_select 0, %s7, %s5
  $region1: #{tpu_custom_call.1} parent=0
    #allocation2 [shape = 'u8[8192]{0}', space=vmem, size = 0x2000, scoped, tag = 'input window, operand 1, single buffered']
    #allocation3 [shape = 's32[1]{0}', space=sflag, size = 0x4, scoped, tag = 'scoped memory for tpu_custom_call.1']
    #allocation4 [shape = 's32[1]{0}', space=sflag, size = 0x4, scoped, tag = 'scoped memory for tpu_custom_call.1']
    #allocation5 [shape = 'u8[131072]{0}', space=vmem, size = 0x20000, scoped, tag = 'input window, operand 2, single buffered']
    #allocation6 [shape = 's32[1]{0}', space=sflag, size = 0x4, scoped, tag = 'scoped memory for tpu_custom_call.1']
    #allocation7 [shape = 'u8[4096]{0}', space=vmem, size = 0x1000, scoped, tag = 'output window, operand 0, single buffered']
    %9 = vsyncpa [#allocation3], 0
    %10 = vsyncpa [#allocation6], 0
    %11 = vsyncpa [#allocation4], 0
    // Predicated region
    $region2: #{tpu_custom_call.1} parent=1 // pred_check
      _
    $region3: #{tpu_custom_call.1} parent=1 // pred_check_branch
      %13 = sbr.rel (0) target = $region5
    $region4: #{tpu_custom_call.1} parent=1 // pred_region
      _
    $region5: #{tpu_custom_call.1} parent=1 // pred_fallthru
      _
    // Predicated region
    $region6: #{tpu_custom_call.1} parent=1 // pred_check
      _
    $region7: #{tpu_custom_call.1} parent=1 // pred_check_branch
      %15 = sbr.rel (0) target = $region9
    $region8: #{tpu_custom_call.1} parent=1 // pred_region
      %s17 = ssub.s32 256, 256
      %18 = vsyncadd [#allocation3], %s17
      %s20 = sshll.u32 [#allocation2], 4
      %s21 = int_to_ptr.vmem [resolvable:$true] %s20
      %23 = dma.hbm_to_vmem [thread:$0]  %s1, 256, %s21, [#allocation3]
    $region9: #{tpu_custom_call.1} parent=1 // pred_fallthru
      _
    // Predicated region
    $region10: #{tpu_custom_call.1} parent=1 // pred_check
      _
    $region11: #{tpu_custom_call.1} parent=1 // pred_check_branch
      %25 = sbr.rel (0) target = $region13
    $region12: #{tpu_custom_call.1} parent=1 // pred_region
      %s27 = ssub.s32 4096, 4096
      %28 = vsyncadd [#allocation6], %s27
      %s29 = sshll.u32 [#allocation5], 4
      %s30 = int_to_ptr.vmem [resolvable:$true] %s29
      %35 = dma.hbm_to_vmem [thread:$0]  %s2, 4096, %s30, [#allocation6], 128, 128, 8
    $region13: #{tpu_custom_call.1} parent=1 // pred_fallthru
      _
    // Predicated region
    $region14: #{tpu_custom_call.1} parent=1 // pred_check
      _
    $region15: #{tpu_custom_call.1} parent=1 // pred_check_branch
      %37 = sbr.rel (0) target = $region17
    $region16: #{tpu_custom_call.1} parent=1 // pred_region
      _
    $region17: #{tpu_custom_call.1} parent=1 // pred_fallthru
      _
    // Predicated region
    $region18: #{tpu_custom_call.1} parent=1 // pred_check
      _
    $region19: #{tpu_custom_call.1} parent=1 // pred_check_branch
      %39 = sbr.rel (0) target = $region21
    $region20: #{tpu_custom_call.1} parent=1 // pred_region
      %40 = dma.done [#allocation3], 256
    $region21: #{tpu_custom_call.1} parent=1 // pred_fallthru
      _
    // Predicated region
    $region22: #{tpu_custom_call.1} parent=1 // pred_check
      _
    $region23: #{tpu_custom_call.1} parent=1 // pred_check_branch
      %42 = sbr.rel (0) target = $region25
    $region24: #{tpu_custom_call.1} parent=1 // pred_region
      %43 = dma.done [#allocation6], 4096
    $region25: #{tpu_custom_call.1} parent=1 // pred_fallthru
      _
    %v44 = vld [vmem:[%s0] sm:$0xff]
    %v45 = vld [vmem:[#allocation2] sm:$0xff]
    %v46 = vld [vmem:[#allocation2 + $0x8] sm:$0xff]
    %48 = vset.pattern.permute.xlu0 0
    %49 = vperm.xlu0 %48, %v44
    %v50 = vpop.permute.xlu0 %49
    %v52 = vlaneseq
    %v53 = vshrl.u32 %v52, 7
    %v54 = vsub.s32 0, %v53
    %v55 = vrot.slane %v45, %v54
    %v56 = vlaneseq
    %v57 = vshrl.u32 %v56, 7
    %v58 = vsub.s32 0, %v57
    %v59 = vrot.slane %v46, %v58
    %v60 = vmul.f32 %v50, %v55
    %v61 = vmul.f32 %v50, %v59
    %v62 = vlaneseq
    %v63 = vshrl.u32 %v62, 7
    %v64 = vsub.s32 4, %v63
    %v65 = vrot.slane %v45, %v64
    %v66 = vlaneseq
    %v67 = vshrl.u32 %v66, 7
    %v68 = vsub.s32 4, %v67
    %v69 = vrot.slane %v46, %v68
    %v70 = vadd.f32 %v65, %v60
    %v71 = vadd.f32 %v69, %v61
    %72 = vset.pattern.permute.xlu0 1
    %73 = vperm.xlu0 %72, %v44
    %v74 = vpop.permute.xlu0 %73
    %v76 = vlaneseq
    %v77 = vshrl.u32 %v76, 7
    %v78 = vsub.s32 1, %v77
    %v79 = vrot.slane %v45, %v78
    %v80 = vlaneseq
    %v81 = vshrl.u32 %v80, 7
    %v82 = vsub.s32 1, %v81
    %v83 = vrot.slane %v46, %v82
    %v84 = vmul.f32 %v74, %v79
    %v85 = vmul.f32 %v74, %v83
    %v86 = vadd.f32 %v70, %v84
    %v87 = vadd.f32 %v71, %v85
    %88 = vset.pattern.permute.xlu0 2
    %89 = vperm.xlu0 %88, %v44
    %v90 = vpop.permute.xlu0 %89
    %v92 = vlaneseq
    %v93 = vshrl.u32 %v92, 7
    %v94 = vsub.s32 2, %v93
    %v95 = vrot.slane %v45, %v94
    %v96 = vlaneseq
    %v97 = vshrl.u32 %v96, 7
    %v98 = vsub.s32 2, %v97
    %v99 = vrot.slane %v46, %v98
    %v100 = vmul.f32 %v90, %v95
    %v101 = vmul.f32 %v90, %v99
    %v102 = vadd.f32 %v86, %v100
    %v103 = vadd.f32 %v87, %v101
    %104 = vset.pattern.permute.xlu0 3
    %105 = vperm.xlu0 %104, %v44
    %v106 = vpop.permute.xlu0 %105
    %v108 = vlaneseq
    %v109 = vshrl.u32 %v108, 7
    %v110 = vsub.s32 3, %v109
    %v111 = vrot.slane %v45, %v110
    %v112 = vlaneseq
    %v113 = vshrl.u32 %v112, 7
    %v114 = vsub.s32 3, %v113
    %v115 = vrot.slane %v46, %v114
    %v116 = vmul.f32 %v106, %v111
    %v117 = vmul.f32 %v106, %v115
    %v118 = vadd.f32 %v102, %v116
    %v119 = vadd.f32 %v103, %v117
    %v120 = vmax.f32 %v118, 0.0
    %v121 = vmax.f32 %v119, 0.0
    %v122 = vld [vmem:[#allocation5] sm:$0xff]
    %v123 = vld [vmem:[#allocation5 + $0x8] sm:$0xff]
    %v124 = vld [vmem:[#allocation5 + $0x10] sm:$0xff]
    %v125 = vld [vmem:[#allocation5 + $0x18] sm:$0xff]
    %v126 = vld [vmem:[#allocation5 + $0x20] sm:$0xff]
    %v127 = vld [vmem:[#allocation5 + $0x28] sm:$0xff]
    %v128 = vld [vmem:[#allocation5 + $0x30] sm:$0xff]
    %v129 = vld [vmem:[#allocation5 + $0x38] sm:$0xff]
    %v130 = vld [vmem:[#allocation5 + $0x40] sm:$0xff]
    %v131 = vld [vmem:[#allocation5 + $0x48] sm:$0xff]
    %v132 = vld [vmem:[#allocation5 + $0x50] sm:$0xff]
    %v133 = vld [vmem:[#allocation5 + $0x58] sm:$0xff]
    %v134 = vld [vmem:[#allocation5 + $0x60] sm:$0xff]
    %v135 = vld [vmem:[#allocation5 + $0x68] sm:$0xff]
    %v136 = vld [vmem:[#allocation5 + $0x70] sm:$0xff]
    %v137 = vld [vmem:[#allocation5 + $0x78] sm:$0xff]
    %v138 = vld [vmem:[#allocation5 + $0x80] sm:$0xff]
    %v139 = vld [vmem:[#allocation5 + $0x88] sm:$0xff]
    %v140 = vld [vmem:[#allocation5 + $0x90] sm:$0xff]
    %v141 = vld [vmem:[#allocation5 + $0x98] sm:$0xff]
    %v142 = vld [vmem:[#allocation5 + $0xa0] sm:$0xff]
    %v143 = vld [vmem:[#allocation5 + $0xa8] sm:$0xff]
    %v144 = vld [vmem:[#allocation5 + $0xb0] sm:$0xff]
    %v145 = vld [vmem:[#allocation5 + $0xb8] sm:$0xff]
    %v146 = vld [vmem:[#allocation5 + $0xc0] sm:$0xff]
    %v147 = vld [vmem:[#allocation5 + $0xc8] sm:$0xff]
    %v148 = vld [vmem:[#allocation5 + $0xd0] sm:$0xff]
    %v149 = vld [vmem:[#allocation5 + $0xd8] sm:$0xff]
    %v150 = vld [vmem:[#allocation5 + $0xe0] sm:$0xff]
    %v151 = vld [vmem:[#allocation5 + $0xe8] sm:$0xff]
    %v152 = vld [vmem:[#allocation5 + $0xf0] sm:$0xff]
    %v153 = vld [vmem:[#allocation5 + $0xf8] sm:$0xff]
    %v154 = vld [vmem:[%s3] sm:$0x1]
    %v156 = vlaneseq
    %v157 = vshrl.u32 %v156, 7
    %v158 = vsub.s32 0, %v157
    %v159 = vrot.slane %v154, %v158
    %161 = vmatprep.subr.mxu0 0.0
    %162 = vmatpush1.msra.mxu0 %v122
    %163 = vmatprep.subr.mxu0 0.0
    %164 = vmatpush1.msra.mxu0 %v123
    %165 = vmatprep.subr.mxu0 0.0
    %166 = vmatpush1.msra.mxu0 %v124
    %167 = vmatprep.subr.mxu0 0.0
    %168 = vmatpush1.msra.mxu0 %v125
    %169 = vmatprep.subr.mxu0 0.0
    %170 = vmatpush1.msra.mxu0 %v126
    %171 = vmatprep.subr.mxu0 0.0
    %172 = vmatpush1.msra.mxu0 %v127
    %173 = vmatprep.subr.mxu0 0.0
    %174 = vmatpush1.msra.mxu0 %v128
    %175 = vmatprep.subr.mxu0 0.0
    %176 = vmatpush1.msra.mxu0 %v129
    %177 = vmatprep.subr.mxu0 0.0
    %178 = vmatpush1.msra.mxu0 %v130
    %179 = vmatprep.subr.mxu0 0.0
    %180 = vmatpush1.msra.mxu0 %v131
    %181 = vmatprep.subr.mxu0 0.0
    %182 = vmatpush1.msra.mxu0 %v132
    %183 = vmatprep.subr.mxu0 0.0
    %184 = vmatpush1.msra.mxu0 %v133
    %185 = vmatprep.subr.mxu0 0.0
    %186 = vmatpush1.msra.mxu0 %v134
    %187 = vmatprep.subr.mxu0 0.0
    %188 = vmatpush1.msra.mxu0 %v135
    %189 = vmatprep.subr.mxu0 0.0
    %190 = vmatpush1.msra.mxu0 %v136
    %191 = vmatprep.subr.mxu0 0.0
    %192 = vmatpush1.msra.mxu0 %v137
    %193 = vmatprep.subr.mxu0 0.0
    %194 = vmatpush1.msra.mxu0 %v138
    %195 = vmatprep.subr.mxu0 0.0
    %196 = vmatpush1.msra.mxu0 %v139
    %197 = vmatprep.subr.mxu0 0.0
    %198 = vmatpush1.msra.mxu0 %v140
    %199 = vmatprep.subr.mxu0 0.0
    %200 = vmatpush1.msra.mxu0 %v141
    %201 = vmatprep.subr.mxu0 0.0
    %202 = vmatpush1.msra.mxu0 %v142
    %203 = vmatprep.subr.mxu0 0.0
    %204 = vmatpush1.msra.mxu0 %v143
    %205 = vmatprep.subr.mxu0 0.0
    %206 = vmatpush1.msra.mxu0 %v144
    %207 = vmatprep.subr.mxu0 0.0
    %208 = vmatpush1.msra.mxu0 %v145
    %209 = vmatprep.subr.mxu0 0.0
    %210 = vmatpush1.msra.mxu0 %v146
    %211 = vmatprep.subr.mxu0 0.0
    %212 = vmatpush1.msra.mxu0 %v147
    %213 = vmatprep.subr.mxu0 0.0
    %214 = vmatpush1.msra.mxu0 %v148
    %215 = vmatprep.subr.mxu0 0.0
    %216 = vmatpush1.msra.mxu0 %v149
    %217 = vmatprep.subr.mxu0 0.0
    %218 = vmatpush1.msra.mxu0 %v150
    %219 = vmatprep.subr.mxu0 0.0
    %220 = vmatpush1.msra.mxu0 %v151
    %221 = vmatprep.subr.mxu0 0.0
    %222 = vmatpush1.msra.mxu0 %v152
    %223 = vmatprep.subr.mxu0 0.0
    %224 = vmatpush1.msra.mxu0 %v153
    %225 = vmatprep.mubr.f32.mxu0 %v121
    %226 = vmatmul.mubr.f32.gmra.mrb[0].mxu0 %v120
    %v227 = vpop.f32.mrb[0].mxu0
    %v228 = vadd.f32 %v159, %v227
    %v229 = vpop.f32.mrb[0].mxu0
    %230 = vdwg.mxu0
    %231 = vst [vmem:[#allocation7] sm:$0xff] %v228
    // Predicated region
    $region26: #{tpu_custom_call.1} parent=1 // pred_check
      _
    $region27: #{tpu_custom_call.1} parent=1 // pred_check_branch
      %233 = sbr.rel (0) target = $region29
    $region28: #{tpu_custom_call.1} parent=1 // pred_region
      %s235 = ssub.s32 128, 128
      %236 = vsyncadd [#allocation4], %s235
      %s238 = sshll.u32 [#allocation7], 4
      %s239 = int_to_ptr.vmem [resolvable:$true] %s238
      %241 = dma.vmem_to_hbm [thread:$0]  %s239, 128, %s4, [#allocation4]
    $region29: #{tpu_custom_call.1} parent=1 // pred_fallthru
      _
    // Predicated region
    $region30: #{tpu_custom_call.1} parent=1 // pred_check
      _
    $region31: #{tpu_custom_call.1} parent=1 // pred_check_branch
      %243 = sbr.rel (0) target = $region33
    $region32: #{tpu_custom_call.1} parent=1 // pred_region
      %244 = dma.done [#allocation4], 128
    $region33: #{tpu_custom_call.1} parent=1 // pred_fallthru
      _
    %245 = vsyncpa [#allocation3], 1
    %246 = vsyncpa [#allocation6], 1
    %247 = vsyncpa [#allocation4], 1

</llo_original>
